<compile_context>
chip_gen: v7x
topology: tpu7x:2x2x1
jax: 0.10.0
libtpu: 0.0.40
codegen_flags: <defaults>
</compile_context>

<pallas_src>
import functools

import jax
import jax.numpy as jnp
from jax.experimental import pallas as pl
from jax.experimental.pallas import tpu as pltpu


# conv0's 8 one-hot 3x3 kernels, expressed as (dy, dx) neighbour offsets
# (out_k[h, w] = m[h + dy, w + dx], zero outside).  Order matches the PyTorch
# weight tensor (out channels 0..7):  (p, q) position of the 1  ->  (p-1, q-1).
_DIR_OFFSETS = ((0, -1), (-1, -1), (-1, 0), (-1, 1),
                (0, 1), (1, 1), (1, 0), (1, -1))

# Same kernels as (p, q) slice offsets into a zero-padded mask (reference only).
_SHIFT_PQ = ((1, 0), (0, 0), (0, 1), (0, 2), (1, 2), (2, 2), (2, 1), (2, 0))

# Row order the kernel builds its shifted planes in:
#   rows 0-2 : [m_up, m, m_dn] shifted dx=-1  -> original direction k = 1, 0, 7
#   rows 3-5 : [m_up, m, m_dn] shifted dx=+1  -> original direction k = 3, 4, 5
#   row  6   : m_up (dx=0)                    -> original direction k = 2
#   row  7   : m_dn (dx=0)                    -> original direction k = 6
# w2/b2 are permuted in the wrapper so softmax row j lines up with plane row j.
_DIR_PERM = (1, 0, 7, 3, 4, 5, 2, 6)


def _ref_seg_kernel(x_ref, s_ref, w1_ref, b1_ref, w2_ref, b2_ref, o_ref, *, img_w):
    x = x_ref[0]                                                   # (C, TP) bf16

    # ---- dir_head: 1x1 conv (+ folded BN) -> ReLU -> 1x1 conv (pixels on lanes)
    h = jnp.dot(w1_ref[...], x, preferred_element_type=jnp.float32) + b1_ref[...]
    h = jnp.maximum(h, 0.0).astype(jnp.bfloat16)   # halve the largest intermediate
    d = jnp.dot(w2_ref[...], h, preferred_element_type=jnp.float32) + b2_ref[...]  # (8, TP)

    # ---- softmax over the 8 (permuted) direction rows, normalization deferred
    d = d - jnp.max(d, axis=0, keepdims=True)
    ed = jnp.exp(d)                                                # (8, TP)
    z = jnp.sum(ed, axis=0, keepdims=True)                         # (1, TP)

    s = s_ref[0]                                   # (4, TP) f32: [m_up, m, m_dn, e]
    planes3 = s[0:3, :]                            # (3, TP) dy = -1, 0, +1
    m = s[1:2, :]
    e = s[3:4, :]
    tp = s.shape[-1]

    # ---- conv0 (one-hot 3x3): +/-1-lane rolls on the stacked dy-planes.
    left3 = pltpu.roll(planes3, 1, 1)              # value at column w-1  (dx = -1)
    right3 = pltpu.roll(planes3, tp - 1, 1)        # value at column w+1  (dx = +1)

    left_sum = jnp.sum(left3 * ed[0:3, :], axis=0, keepdims=True)
    right_sum = jnp.sum(right3 * ed[3:6, :], axis=0, keepdims=True)
    mid_sum = s[0:1, :] * ed[6:7, :] + s[2:3, :] * ed[7:8, :]

    # Column-boundary masks (tiles always start on a row boundary, so a flat
    # iota % W gives the in-image column; the whole dx=-1 / dx=+1 group is
    # invalid at column 0 / W-1 respectively).
    col = jax.lax.broadcasted_iota(jnp.int32, (1, tp), 1) % img_w
    acc = (jnp.where(col != 0, left_sum, 0.0)
           + jnp.where(col != (img_w - 1), right_sum, 0.0)
           + mid_sum)

    refined = acc * pl.reciprocal(z, approx=True)

    # ---- edge gate:  sigmoid(e) > 0.5  <=>  e > 0
    o_ref[0] = jnp.where(e > 0.0, refined, m)


def _choose_tile_pixels(H, W, max_tile_pixels, n_batch):
    """Whole-row pixel tile, multiple of 128, <= cap; prefers >= 4 grid steps."""
    P = H * W
    cands = [th * W for th in range(1, H + 1)
             if H % th == 0 and (th * W) % 128 == 0]
    if not cands:
        return P                                   # full plane: always a legal block
    under = [tp for tp in cands if tp <= max_tile_pixels]
    if not under:
        return min(cands)                          # smallest legal tile, not full plane
    best = max(under)
    # Keep both v7x TensorCores fed when N*T would otherwise be tiny.
    if n_batch * (P // best) < 4:
        ok = [tp for tp in under if n_batch * (P // tp) >= 4]
        if ok:
            best = max(ok)
    return best


def ref_seg_forward(x, masks_pred, edge_pred, params, *, max_tile_pixels=32768):
    """x: (N, 32, H, W); masks_pred, edge_pred: (N, 1, H, W)  (PyTorch NCHW)."""
    N, C, H, W = x.shape
    P = H * W

    x_flat = x.reshape(N, C, P).astype(jnp.bfloat16)               # free NCHW reshape

    # Pack [m_up, m, m_dn, e] into one (N, 4, P) slab: one DMA per grid step,
    # and the +/-1-row halo is carried as data so pixel tiles need no halo DMAs.
    m2 = masks_pred.reshape(N, H, W).astype(jnp.float32)
    e2 = edge_pred.reshape(N, H, W).astype(jnp.float32)
    zrow = jnp.zeros((N, 1, W), jnp.float32)
    m_up = jnp.concatenate([zrow, m2[:, :-1, :]], axis=1)          # m[h-1, w]
    m_dn = jnp.concatenate([m2[:, 1:, :], zrow], axis=1)           # m[h+1, w]
    slab = jnp.stack([m_up, m2, m_dn, e2], axis=1).reshape(N, 4, P)

    w1, b1, w2, b2 = params                        # (C,C), (C,1), (8,C), (8,1)
    perm = jnp.asarray(_DIR_PERM, jnp.int32)
    w1_b = w1.astype(jnp.bfloat16)
    b1_f = b1.astype(jnp.float32)
    w2_b = w2[perm, :].astype(jnp.bfloat16)        # permuted to match plane stacking
    b2_f = b2[perm, :].astype(jnp.float32)

    TP = _choose_tile_pixels(H, W, max_tile_pixels, N)
    assert P % TP == 0 and TP % W == 0, "pixel tiles must start on a row boundary"
    T = P // TP

    kernel = functools.partial(_ref_seg_kernel, img_w=W)

    cost = pl.CostEstimate(
        flops=int(2 * N * P * (C * C + 8 * C)),
        transcendentals=int(9 * N * P),
        bytes_accessed=int(N * P * (2 * C + 4 * 4 + 4)),
    )

    out = pl.pallas_call(
        kernel,
        out_shape=jax.ShapeDtypeStruct((N, 1, P), jnp.float32),
        grid_spec=pltpu.PrefetchScalarGridSpec(
            num_scalar_prefetch=0,
            grid=(N, T),
            in_specs=[
                pl.BlockSpec((1, C, TP), lambda n, t: (n, 0, t)),   # x (bf16)
                pl.BlockSpec((1, 4, TP), lambda n, t: (n, 0, t)),   # packed planes
                pl.BlockSpec((C, C), lambda n, t: (0, 0)),          # w1 (bf16)
                pl.BlockSpec((C, 1), lambda n, t: (0, 0)),          # b1 (f32)
                pl.BlockSpec((8, C), lambda n, t: (0, 0)),          # w2 (bf16, permuted)
                pl.BlockSpec((8, 1), lambda n, t: (0, 0)),          # b2 (f32, permuted)
            ],
            out_specs=pl.BlockSpec((1, 1, TP), lambda n, t: (n, 0, t)),
        ),
        compiler_params=pltpu.CompilerParams(
            dimension_semantics=("parallel", "parallel"),
            vmem_limit_bytes=48 * 1024 * 1024),
        cost_estimate=cost,
    )(x_flat, slab, w1_b, b1_f, w2_b, b2_f)

    return out.reshape(N, 1, H, W)


def init_params(key):
    """Deterministic synthetic parameters; BN (eval mode) folded into conv1."""
    C = 32
    k1, k2, k3, k4, k5, k6 = jax.random.split(key, 6)
    w1 = 0.1 * jax.random.normal(k1, (C, C), jnp.float32)          # Conv2d(32,32,1) (out,in)
    b1 = 0.1 * jax.random.normal(k2, (C,), jnp.float32)
    gamma = 1.0 + 0.1 * jax.random.normal(k3, (C,), jnp.float32)   # BatchNorm2d(32)
    beta = 0.1 * jax.random.normal(k4, (C,), jnp.float32)
    running_mean = jnp.zeros((C,), jnp.float32)
    running_var = jnp.ones((C,), jnp.float32)
    eps = 1e-5
    w2 = 0.1 * jax.random.normal(k5, (8, C), jnp.float32)          # Conv2d(32,8,1)
    b2 = 0.1 * jax.random.normal(k6, (8,), jnp.float32)

    s = gamma / jnp.sqrt(running_var + eps)
    w1_eff = w1 * s[:, None]                                       # (Cout, Cin), BN folded
    b1_eff = (s * (b1 - running_mean) + beta).reshape(C, 1)
    return w1_eff, b1_eff, w2, b2.reshape(8, 1)


def ref_seg_reference(x, masks_pred, edge_pred, params):
    """Pure-JAX reference mirroring the PyTorch forward (eval-mode BN folded)."""
    w1, b1, w2, b2 = params
    N, C, H, W = x.shape
    h = jnp.einsum('oc,nchw->nohw', w1, x) + b1.reshape(1, C, 1, 1)
    h = jnp.maximum(h, 0.0)
    d = jnp.einsum('oc,nchw->nohw', w2, h) + b2.reshape(1, 8, 1, 1)
    direc = jax.nn.softmax(d, axis=1)
    m = masks_pred[:, 0]
    mpad = jnp.pad(m, ((0, 0), (1, 1), (1, 1)))
    shifted = jnp.stack([mpad[:, p:p + H, q:q + W] for p, q in _SHIFT_PQ], axis=1)
    refined = jnp.sum(shifted * direc, axis=1, keepdims=True)
    em = (jax.nn.sigmoid(edge_pred) > 0.5).astype(jnp.float32)
    return refined * em + masks_pred * (1.0 - em)


if __name__ == "__main__":
    key = jax.random.PRNGKey(0)
    kx, km, ke, kp, kx2, km2, ke2 = jax.random.split(key, 7)

    C, H, W = 32, 16, 16
    params = init_params(kp)

    # Case 1: N=2 -> tile chooser picks TP=128 (grid (2, 2)); exercises pixel
    # tiling, in-tile roll wrap + column masks and row halos from the slab.
    N = 2
    x = jax.random.normal(kx, (N, C, H, W), jnp.float32)
    masks_pred = jax.random.normal(km, (N, 1, H, W), jnp.float32)
    edge_pred = jax.random.normal(ke, (N, 1, H, W), jnp.float32)
    ref = ref_seg_reference(x, masks_pred, edge_pred, params)
    out = jax.block_until_ready(ref_seg_forward(x, masks_pred, edge_pred, params))
    assert out.shape == (N, 1, H, W)
    if not jnp.allclose(out, ref, rtol=1e-2, atol=1e-2):
        raise AssertionError("Pallas kernel (N=2, tiled) does not match JAX reference")

    # Case 2: N=4 -> tile chooser picks the full-plane tile TP=256 (grid (4, 1)).
    N = 4
    x = jax.random.normal(kx2, (N, C, H, W), jnp.float32)
    masks_pred = jax.random.normal(km2, (N, 1, H, W), jnp.float32)
    edge_pred = jax.random.normal(ke2, (N, 1, H, W), jnp.float32)
    ref = ref_seg_reference(x, masks_pred, edge_pred, params)
    out = jax.block_until_ready(ref_seg_forward(x, masks_pred, edge_pred, params))
    if not jnp.allclose(out, ref, rtol=1e-2, atol=1e-2):
        raise AssertionError("Pallas kernel (N=4, full-plane tile) does not match JAX reference")

    print("KERNEL_OK")
</pallas_src>

<mosaic_0001>
module attributes {stable_mosaic.version = 11 : i64} {
  func.func @_ref_seg_kernel(%arg0: i32, %arg1: i32, %arg2: memref<1x32x128xbf16, #tpu.memory_space<vmem>>, %arg3: memref<1x4x128xf32, #tpu.memory_space<vmem>>, %arg4: memref<32x32xbf16, #tpu.memory_space<vmem>>, %arg5: memref<32x1xf32, #tpu.memory_space<vmem>>, %arg6: memref<8x32xbf16, #tpu.memory_space<vmem>>, %arg7: memref<8x1xf32, #tpu.memory_space<vmem>>, %arg8: memref<1x1x128xf32, #tpu.memory_space<vmem>>) attributes {dimension_semantics = [#tpu.dimension_semantics<parallel>, #tpu.dimension_semantics<parallel>], iteration_bounds = array<i64: 2, 2>, scalar_prefetch = 0 : i64, scratch_operands = 0 : i64, tpu.core_type = #tpu.core_type<tc>, window_params = [{transform_indices = @transform_0, window_bounds = array<i64: 1, 32, 128>}, {transform_indices = @transform_1, window_bounds = array<i64: 1, 4, 128>}, {pipeline_mode = #tpu.pipeline_mode<synchronous>, transform_indices = @transform_2, window_bounds = array<i64: 32, 32>}, {pipeline_mode = #tpu.pipeline_mode<synchronous>, transform_indices = @transform_3, window_bounds = array<i64: 32, 1>}, {pipeline_mode = #tpu.pipeline_mode<synchronous>, transform_indices = @transform_4, window_bounds = array<i64: 8, 32>}, {pipeline_mode = #tpu.pipeline_mode<synchronous>, transform_indices = @transform_5, window_bounds = array<i64: 8, 1>}, {transform_indices = @transform_6, window_bounds = array<i64: 1, 1, 128>}]} {
    %c0 = arith.constant 0 : index
    %c0_0 = arith.constant 0 : index
    %c0_1 = arith.constant 0 : index
    %0 = vector.load %arg2[%c0, %c0_0, %c0_1] : memref<1x32x128xbf16, #tpu.memory_space<vmem>>, vector<1x32x128xbf16>
    %1 = vector.shape_cast %0 : vector<1x32x128xbf16> to vector<32x128xbf16>
    %c0_2 = arith.constant 0 : index
    %c0_3 = arith.constant 0 : index
    %2 = vector.load %arg4[%c0_2, %c0_3] : memref<32x32xbf16, #tpu.memory_space<vmem>>, vector<32x32xbf16>
    %cst = arith.constant dense<0.000000e+00> : vector<32x128xf32>
    %3 = tpu.matmul %2, %1, %cst {dimension_numbers = #tpu.dot_dimension_numbers<[1], [0], [0], [1], [0, 0, 1, 1], [], []>} : vector<32x32xbf16>, vector<32x128xbf16>, vector<32x128xf32> -> vector<32x128xf32>
    %c0_4 = arith.constant 0 : index
    %c0_5 = arith.constant 0 : index
    %4 = vector.load %arg5[%c0_4, %c0_5] : memref<32x1xf32, #tpu.memory_space<vmem>>, vector<32x1xf32>
    %5 = vector.broadcast %4 : vector<32x1xf32> to vector<32x128xf32>
    %6 = arith.addf %3, %5 : vector<32x128xf32>
    %cst_6 = arith.constant 0.000000e+00 : f32
    %7 = vector.broadcast %cst_6 : f32 to vector<32x128xf32>
    %8 = arith.maximumf %6, %7 : vector<32x128xf32>
    %9 = arith.truncf %8 : vector<32x128xf32> to vector<32x128xbf16>
    %c0_7 = arith.constant 0 : index
    %c0_8 = arith.constant 0 : index
    %10 = vector.load %arg6[%c0_7, %c0_8] : memref<8x32xbf16, #tpu.memory_space<vmem>>, vector<8x32xbf16>
    %cst_9 = arith.constant dense<0.000000e+00> : vector<8x128xf32>
    %11 = tpu.matmul %10, %9, %cst_9 {dimension_numbers = #tpu.dot_dimension_numbers<[1], [0], [0], [1], [0, 0, 1, 1], [], []>} : vector<8x32xbf16>, vector<32x128xbf16>, vector<8x128xf32> -> vector<8x128xf32>
    %c0_10 = arith.constant 0 : index
    %c0_11 = arith.constant 0 : index
    %12 = vector.load %arg7[%c0_10, %c0_11] : memref<8x1xf32, #tpu.memory_space<vmem>>, vector<8x1xf32>
    %13 = vector.broadcast %12 : vector<8x1xf32> to vector<8x128xf32>
    %14 = arith.addf %11, %13 : vector<8x128xf32>
    %cst_12 = arith.constant dense<0xFF800000> : vector<128xf32>
    %15 = vector.multi_reduction <maximumf>, %14, %cst_12 [0] : vector<8x128xf32> to vector<128xf32>
    %16 = vector.shape_cast %15 : vector<128xf32> to vector<1x128xf32>
    %17 = vector.broadcast %16 : vector<1x128xf32> to vector<8x128xf32>
    %18 = arith.subf %14, %17 : vector<8x128xf32>
    %19 = math.exp %18 : vector<8x128xf32>
    %cst_13 = arith.constant dense<0.000000e+00> : vector<128xf32>
    %20 = vector.multi_reduction <add>, %19, %cst_13 [0] : vector<8x128xf32> to vector<128xf32>
    %21 = vector.shape_cast %20 : vector<128xf32> to vector<1x128xf32>
    %c0_14 = arith.constant 0 : index
    %c0_15 = arith.constant 0 : index
    %c0_16 = arith.constant 0 : index
    %22 = vector.load %arg3[%c0_14, %c0_15, %c0_16] : memref<1x4x128xf32, #tpu.memory_space<vmem>>, vector<1x4x128xf32>
    %23 = vector.shape_cast %22 : vector<1x4x128xf32> to vector<4x128xf32>
    %24 = vector.extract_strided_slice %23 {offsets = [0, 0], sizes = [3, 128], strides = [1, 1]} : vector<4x128xf32> to vector<3x128xf32>
    %25 = vector.extract_strided_slice %23 {offsets = [1, 0], sizes = [1, 128], strides = [1, 1]} : vector<4x128xf32> to vector<1x128xf32>
    %26 = vector.extract_strided_slice %23 {offsets = [3, 0], sizes = [1, 128], strides = [1, 1]} : vector<4x128xf32> to vector<1x128xf32>
    %c1_i32 = arith.constant 1 : i32
    %27 = tpu.dynamic_rotate %24 by %c1_i32 dim 1 : vector<3x128xf32>, i32 -> vector<3x128xf32>
    %c127_i32 = arith.constant 127 : i32
    %28 = tpu.dynamic_rotate %24 by %c127_i32 dim 1 : vector<3x128xf32>, i32 -> vector<3x128xf32>
    %29 = vector.extract_strided_slice %19 {offsets = [0, 0], sizes = [3, 128], strides = [1, 1]} : vector<8x128xf32> to vector<3x128xf32>
    %30 = arith.mulf %27, %29 : vector<3x128xf32>
    %cst_17 = arith.constant dense<0.000000e+00> : vector<128xf32>
    %31 = vector.multi_reduction <add>, %30, %cst_17 [0] : vector<3x128xf32> to vector<128xf32>
    %32 = vector.shape_cast %31 : vector<128xf32> to vector<1x128xf32>
    %33 = vector.extract_strided_slice %19 {offsets = [3, 0], sizes = [3, 128], strides = [1, 1]} : vector<8x128xf32> to vector<3x128xf32>
    %34 = arith.mulf %28, %33 : vector<3x128xf32>
    %cst_18 = arith.constant dense<0.000000e+00> : vector<128xf32>
    %35 = vector.multi_reduction <add>, %34, %cst_18 [0] : vector<3x128xf32> to vector<128xf32>
    %36 = vector.shape_cast %35 : vector<128xf32> to vector<1x128xf32>
    %37 = vector.extract_strided_slice %23 {offsets = [0, 0], sizes = [1, 128], strides = [1, 1]} : vector<4x128xf32> to vector<1x128xf32>
    %38 = vector.extract_strided_slice %19 {offsets = [6, 0], sizes = [1, 128], strides = [1, 1]} : vector<8x128xf32> to vector<1x128xf32>
    %39 = arith.mulf %37, %38 : vector<1x128xf32>
    %40 = vector.extract_strided_slice %23 {offsets = [2, 0], sizes = [1, 128], strides = [1, 1]} : vector<4x128xf32> to vector<1x128xf32>
    %41 = vector.extract_strided_slice %19 {offsets = [7, 0], sizes = [1, 128], strides = [1, 1]} : vector<8x128xf32> to vector<1x128xf32>
    %42 = arith.mulf %40, %41 : vector<1x128xf32>
    %43 = arith.addf %39, %42 : vector<1x128xf32>
    %44 = tpu.iota {dimensions = array<i32: 1>} : vector<1x128xi32>
    %c16_i32 = arith.constant 16 : i32
    %c0_i32 = arith.constant 0 : i32
    %45 = arith.cmpi eq, %c16_i32, %c0_i32 : i32
    %c1_i32_19 = arith.constant 1 : i32
    %46 = arith.select %45, %c1_i32_19, %c16_i32 : i32
    %47 = vector.broadcast %46 : i32 to vector<1x128xi32>
    %48 = arith.remsi %44, %47 : vector<1x128xi32>
    %c0_i32_20 = arith.constant 0 : i32
    %49 = vector.broadcast %c0_i32_20 : i32 to vector<1x128xi32>
    %50 = arith.cmpi ne, %48, %49 : vector<1x128xi32>
    %c0_i32_21 = arith.constant 0 : i32
    %51 = vector.broadcast %c0_i32_21 : i32 to vector<1x128xi32>
    %52 = arith.cmpi slt, %48, %51 : vector<1x128xi32>
    %c0_i32_22 = arith.constant 0 : i32
    %53 = arith.cmpi slt, %46, %c0_i32_22 : i32
    %54 = vector.broadcast %53 : i1 to vector<1x128xi1>
    %55 = vector.broadcast %54 : vector<1x128xi1> to vector<1x128xi1>
    %56 = arith.xori %52, %55 : vector<1x128xi1>
    %57 = arith.andi %56, %50 : vector<1x128xi1>
    %58 = vector.broadcast %46 : i32 to vector<1x128xi32>
    %59 = arith.addi %48, %58 : vector<1x128xi32>
    %60 = arith.select %57, %59, %48 : vector<1x128xi1>, vector<1x128xi32>
    %c0_i32_23 = arith.constant 0 : i32
    %61 = vector.broadcast %c0_i32_23 : i32 to vector<1x128xi32>
    %62 = arith.cmpi ne, %60, %61 : vector<1x128xi32>
    %cst_24 = arith.constant 0.000000e+00 : f32
    %63 = vector.broadcast %cst_24 : f32 to vector<1x128xf32>
    %64 = arith.select %62, %32, %63 : vector<1x128xi1>, vector<1x128xf32>
    %c15_i32 = arith.constant 15 : i32
    %65 = vector.broadcast %c15_i32 : i32 to vector<1x128xi32>
    %66 = arith.cmpi ne, %60, %65 : vector<1x128xi32>
    %cst_25 = arith.constant 0.000000e+00 : f32
    %67 = vector.broadcast %cst_25 : f32 to vector<1x128xf32>
    %68 = arith.select %66, %36, %67 : vector<1x128xi1>, vector<1x128xf32>
    %69 = arith.addf %64, %68 : vector<1x128xf32>
    %70 = arith.addf %69, %43 : vector<1x128xf32>
    %71 = tpu.reciprocal %21 {approx = true} : vector<1x128xf32> -> vector<1x128xf32>
    %72 = arith.mulf %70, %71 : vector<1x128xf32>
    %cst_26 = arith.constant 0.000000e+00 : f32
    %73 = vector.broadcast %cst_26 : f32 to vector<1x128xf32>
    %74 = arith.cmpf ogt, %26, %73 : vector<1x128xf32>
    %75 = arith.select %74, %72, %25 : vector<1x128xi1>, vector<1x128xf32>
    %c0_27 = arith.constant 0 : index
    %c0_28 = arith.constant 0 : index
    %c0_29 = arith.constant 0 : index
    %76 = vector.load %arg8[%c0_27, %c0_28, %c0_29] : memref<1x1x128xf32, #tpu.memory_space<vmem>>, vector<1x1x128xf32>
    %77 = vector.shape_cast %76 : vector<1x1x128xf32> to vector<1x128xf32>
    %78 = vector.shape_cast %75 : vector<1x128xf32> to vector<1x1x128xf32>
    tpu.vector_store %arg8[%c0_27, %c0_28, %c0_29], %78 {strides = array<i32>} : memref<1x1x128xf32, #tpu.memory_space<vmem>>, vector<1x1x128xf32>,
    return
  }
  func.func @transform_0(%arg0: i32, %arg1: i32) -> (i32, i32, i32) {
    %c0_i32 = arith.constant 0 : i32
    %c0_i32_0 = arith.constant 0 : i32
    return %arg0, %c0_i32, %arg1 : i32, i32, i32
  }
  func.func @transform_1(%arg0: i32, %arg1: i32) -> (i32, i32, i32) {
    %c0_i32 = arith.constant 0 : i32
    %c0_i32_0 = arith.constant 0 : i32
    return %arg0, %c0_i32, %arg1 : i32, i32, i32
  }
  func.func @transform_2(%arg0: i32, %arg1: i32) -> (i32, i32) {
    %c0_i32 = arith.constant 0 : i32
    %c0_i32_0 = arith.constant 0 : i32
    %c0_i32_1 = arith.constant 0 : i32
    return %c0_i32, %c0_i32_0 : i32, i32
  }
  func.func @transform_3(%arg0: i32, %arg1: i32) -> (i32, i32) {
    %c0_i32 = arith.constant 0 : i32
    %c0_i32_0 = arith.constant 0 : i32
    %c0_i32_1 = arith.constant 0 : i32
    return %c0_i32, %c0_i32_0 : i32, i32
  }
  func.func @transform_4(%arg0: i32, %arg1: i32) -> (i32, i32) {
    %c0_i32 = arith.constant 0 : i32
    %c0_i32_0 = arith.constant 0 : i32
    %c0_i32_1 = arith.constant 0 : i32
    return %c0_i32, %c0_i32_0 : i32, i32
  }
  func.func @transform_5(%arg0: i32, %arg1: i32) -> (i32, i32) {
    %c0_i32 = arith.constant 0 : i32
    %c0_i32_0 = arith.constant 0 : i32
    %c0_i32_1 = arith.constant 0 : i32
    return %c0_i32, %c0_i32_0 : i32, i32
  }
  func.func @transform_6(%arg0: i32, %arg1: i32) -> (i32, i32, i32) {
    %c0_i32 = arith.constant 0 : i32
    %c0_i32_0 = arith.constant 0 : i32
    return %arg0, %c0_i32, %arg1 : i32, i32, i32
  }
}

</mosaic_0001>

<llo_original>
// kernel: tpu_custom_call.1
$region0: #{tpu_custom_call.1}
  #allocation0 [shape = 'u32[]', space=smem, size = 0x4, offset = 0x4, fixed_abs, tag = 'smem constant byte address 0x4 - core index']
  #allocation1 [shape = 'u32[144,128]{1,0:T(1,128)}', space=vmem, size = 0x12000, scoped, tag = 'internal scratch']
  %s0 = inlined_call_operand.hbm [shape: bf16[2,32,256], index: 0, kind: input, shape index: {}]
  %s1 = inlined_call_operand.vmem [shape: f32[2,4,256], index: 1, kind: input, shape index: {}]
  %s2 = inlined_call_operand.vmem [shape: bf16[32,32], index: 2, kind: input, shape index: {}]
  %s3 = inlined_call_operand.vmem [shape: f32[32,1], index: 3, kind: input, shape index: {}]
  %s4 = inlined_call_operand.vmem [shape: bf16[8,32], index: 4, kind: input, shape index: {}]
  %s5 = inlined_call_operand.vmem [shape: f32[8,1], index: 5, kind: input, shape index: {}]
  %s6 = inlined_call_operand.hbm [shape: f32[2,1,256], index: 6, kind: output, shape index: {}]
  %s7 = sld [smem:[#allocation0]]
  $region61: #{tpu_custom_call.1} parent=0
    _
  %s9 = ssub.s32 1, %s7
  %s10 = scalar_select 0, %s9, %s7
  $region1: #{tpu_custom_call.1} parent=0
    #allocation2 [shape = 'u8[16384]{0}', space=vmem, size = 0x4000, scoped, tag = 'input window, operand 0']
    #allocation3 [shape = 's32[2]{0}', space=sflag, size = 0x8, scoped, tag = 'scoped memory for tpu_custom_call.1']
    #allocation4 [shape = 's32[2]{0}', space=sflag, size = 0x8, scoped, tag = 'scoped memory for tpu_custom_call.1']
    #allocation5 [shape = 'u8[1024]{0}', space=vmem, size = 0x400, scoped, tag = 'output window, operand 0']
    %11 = vsyncpa [#allocation3], 0
    %s12 = scalar_lea.sflag [#allocation3], 1
    %13 = vsyncpa %s12, 0
    %14 = vsyncpa [#allocation4], 0
    %s15 = scalar_lea.sflag [#allocation4], 1
    %16 = vsyncpa %s15, 0
    loop: start=0, step=1, limit=6
    $region2: #{tpu_custom_call.1} parent=1 // loop_pre_header
      _
    $region3: #{tpu_custom_call.1} parent=1 // loop_header
      %s18 = sphi 0, %s22
      %p19 = scmp.ge.s32.totalorder %s18, 6
      %s25 = sphi 0, %s37
      %s26 = sphi 0, %s33
      %s27 = sphi 0, %s25
      %s28 = sphi 0, %s26
      %s29 = sphi 0, %s27
      %s30 = sphi 0, %s28
      %s42 = sphi 0, %s44
      %s45 = sphi 0, %s42
      %s46 = sphi 0, %s45
      %s62 = sphi 0, %s46
      %s70 = sphi 0, %s72
      %s73 = sphi 0, %s70
      %s74 = sphi 0, %s73
      %s90 = sphi 0, %s74
      %s94 = sphi 0, %s94
      %s96 = sphi 0, %s94
      %s97 = sphi 0, %s96
      %s111 = sphi 0, %s97
      %s115 = sphi 0, %s115
      %s117 = sphi 0, %s115
      %s118 = sphi 0, %s117
      %s132 = sphi 0, %s118
      %s136 = sphi 0, %s136
      %s138 = sphi 0, %s136
      %s139 = sphi 0, %s138
      %s153 = sphi 0, %s139
      %s157 = sphi 0, %s157
      %s159 = sphi 0, %s157
      %s160 = sphi 0, %s159
      %s174 = sphi 0, %s160
      %s182 = sphi 0, %s184
      %s185 = sphi 0, %s182
      %s186 = sphi 0, %s185
      %s202 = sphi 0, %s186
    $region4: #{tpu_custom_call.1} parent=1 // loop_header_branch
      %21 = sbr.rel (%p19) target = $region8
    $region5: #{tpu_custom_call.1} parent=1 // loop_body
      %s23 = ssub.s32 %s18, 1
      %s24 = ssub.s32 %s18, 2
      %s31 = sadd.s32 1, %s26
      %p32 = scmp.ge.s32.totalorder %s31, 2
      %s33 = scalar_select %p32, 0, %s31
      %s34 = sadd.s32 1, %s25
      %s35 = scalar_select %p32, %s34, %s25
      %p36 = scmp.ge.s32.totalorder %s35, 2
      %s37 = scalar_select %p36, 0, %s35
      %s38 = ssub.s32 %s25, %s37
      %s39 = ssub.s32 %s26, %s33
      %s40 = sor.u32 %s38, %s39
      %p41 = scmp.eq.s32.totalorder %s40, 0
      %s43 = sadd.s32 %s42, 1
      %s44 = scalar_select %p41, %s42, %s43
      %p47 = pneg %p41
      %p48 = scmp.eq.s32.totalorder %s18, 3
      %p49 = por %p47, %p48
      %p50 = scmp.ne.s32.totalorder %s42, %s45
      %p51 = scmp.eq.s32.totalorder %s18, 0
      %p52 = por %p50, %p51
      %p53 = scmp.ne.s32.totalorder %s42, %s45
      %p54 = scmp.eq.s32.totalorder %s23, 3
      %p55 = por %p53, %p54
      %p56 = scmp.ne.s32.totalorder %s45, %s46
      %p57 = scmp.eq.s32.totalorder %s23, 0
      %p58 = por %p56, %p57
      %p59 = scmp.ne.s32.totalorder %s45, %s46
      %p60 = scmp.eq.s32.totalorder %s24, 3
      %p61 = por %p59, %p60
      %p63 = scmp.ne.s32.totalorder %s46, %s62
      %p64 = scmp.eq.s32.totalorder %s24, 0
      %p65 = por %p63, %p64
      %s66 = ssub.s32 %s25, %s37
      %s67 = ssub.s32 %s26, %s33
      %s68 = sor.u32 %s66, %s67
      %p69 = scmp.eq.s32.totalorder %s68, 0
      %s71 = sadd.s32 %s70, 1
      %s72 = scalar_select %p69, %s70, %s71
      %p75 = pneg %p69
      %p76 = scmp.eq.s32.totalorder %s18, 3
      %p77 = por %p75, %p76
      %p78 = scmp.ne.s32.totalorder %s70, %s73
      %p79 = scmp.eq.s32.totalorder %s18, 0
      %p80 = por %p78, %p79
      %p81 = scmp.ne.s32.totalorder %s70, %s73
      %p82 = scmp.eq.s32.totalorder %s23, 3
      %p83 = por %p81, %p82
      %p84 = scmp.ne.s32.totalorder %s73, %s74
      %p85 = scmp.eq.s32.totalorder %s23, 0
      %p86 = por %p84, %p85
      %p87 = scmp.ne.s32.totalorder %s73, %s74
      %p88 = scmp.eq.s32.totalorder %s24, 3
      %p89 = por %p87, %p88
      %p91 = scmp.ne.s32.totalorder %s74, %s90
      %p92 = scmp.eq.s32.totalorder %s24, 0
      %p93 = por %p91, %p92
      %s95 = sadd.s32 %s94, 1
      %p98 = scmp.eq.s32.totalorder %s18, 3
      %p99 = scmp.ne.s32.totalorder %s94, %s96
      %p100 = scmp.eq.s32.totalorder %s18, 0
      %p101 = por %p99, %p100
      %p102 = scmp.ne.s32.totalorder %s94, %s96
      %p103 = scmp.eq.s32.totalorder %s23, 3
      %p104 = por %p102, %p103
      %p105 = scmp.ne.s32.totalorder %s96, %s97
      %p106 = scmp.eq.s32.totalorder %s23, 0
      %p107 = por %p105, %p106
      %p108 = scmp.ne.s32.totalorder %s96, %s97
      %p109 = scmp.eq.s32.totalorder %s24, 3
      %p110 = por %p108, %p109
      %p112 = scmp.ne.s32.totalorder %s97, %s111
      %p113 = scmp.eq.s32.totalorder %s24, 0
      %p114 = por %p112, %p113
      %s116 = sadd.s32 %s115, 1
      %p119 = scmp.eq.s32.totalorder %s18, 3
      %p120 = scmp.ne.s32.totalorder %s115, %s117
      %p121 = scmp.eq.s32.totalorder %s18, 0
      %p122 = por %p120, %p121
      %p123 = scmp.ne.s32.totalorder %s115, %s117
      %p124 = scmp.eq.s32.totalorder %s23, 3
      %p125 = por %p123, %p124
      %p126 = scmp.ne.s32.totalorder %s117, %s118
      %p127 = scmp.eq.s32.totalorder %s23, 0
      %p128 = por %p126, %p127
      %p129 = scmp.ne.s32.totalorder %s117, %s118
      %p130 = scmp.eq.s32.totalorder %s24, 3
      %p131 = por %p129, %p130
      %p133 = scmp.ne.s32.totalorder %s118, %s132
      %p134 = scmp.eq.s32.totalorder %s24, 0
      %p135 = por %p133, %p134
      %s137 = sadd.s32 %s136, 1
      %p140 = scmp.eq.s32.totalorder %s18, 3
      %p141 = scmp.ne.s32.totalorder %s136, %s138
      %p142 = scmp.eq.s32.totalorder %s18, 0
      %p143 = por %p141, %p142
      %p144 = scmp.ne.s32.totalorder %s136, %s138
      %p145 = scmp.eq.s32.totalorder %s23, 3
      %p146 = por %p144, %p145
      %p147 = scmp.ne.s32.totalorder %s138, %s139
      %p148 = scmp.eq.s32.totalorder %s23, 0
      %p149 = por %p147, %p148
      %p150 = scmp.ne.s32.totalorder %s138, %s139
      %p151 = scmp.eq.s32.totalorder %s24, 3
      %p152 = por %p150, %p151
      %p154 = scmp.ne.s32.totalorder %s139, %s153
      %p155 = scmp.eq.s32.totalorder %s24, 0
      %p156 = por %p154, %p155
      %s158 = sadd.s32 %s157, 1
      %p161 = scmp.eq.s32.totalorder %s18, 3
      %p162 = scmp.ne.s32.totalorder %s157, %s159
      %p163 = scmp.eq.s32.totalorder %s18, 0
      %p164 = por %p162, %p163
      %p165 = scmp.ne.s32.totalorder %s157, %s159
      %p166 = scmp.eq.s32.totalorder %s23, 3
      %p167 = por %p165, %p166
      %p168 = scmp.ne.s32.totalorder %s159, %s160
      %p169 = scmp.eq.s32.totalorder %s23, 0
      %p170 = por %p168, %p169
      %p171 = scmp.ne.s32.totalorder %s159, %s160
      %p172 = scmp.eq.s32.totalorder %s24, 3
      %p173 = por %p171, %p172
      %p175 = scmp.ne.s32.totalorder %s160, %s174
      %p176 = scmp.eq.s32.totalorder %s24, 0
      %p177 = por %p175, %p176
      %s178 = ssub.s32 %s25, %s37
      %s179 = ssub.s32 %s26, %s33
      %s180 = sor.u32 %s178, %s179
      %p181 = scmp.eq.s32.totalorder %s180, 0
      %s183 = sadd.s32 %s182, 1
      %s184 = scalar_select %p181, %s182, %s183
      %p187 = pneg %p181
      %p188 = scmp.eq.s32.totalorder %s18, 3
      %p189 = por %p187, %p188
      %p190 = scmp.ne.s32.totalorder %s182, %s185
      %p191 = scmp.eq.s32.totalorder %s18, 0
      %p192 = por %p190, %p191
      %p193 = scmp.ne.s32.totalorder %s182, %s185
      %p194 = scmp.eq.s32.totalorder %s23, 3
      %p195 = por %p193, %p194
      %p196 = scmp.ne.s32.totalorder %s185, %s186
      %p197 = scmp.eq.s32.totalorder %s23, 0
      %p198 = por %p196, %p197
      %p199 = scmp.ne.s32.totalorder %s185, %s186
      %p200 = scmp.eq.s32.totalorder %s24, 3
      %p201 = por %p199, %p200
      %p203 = scmp.ne.s32.totalorder %s186, %s202
      %p204 = scmp.eq.s32.totalorder %s24, 0
      %p205 = por %p203, %p204
      %p206 = scmp.le.s32.totalorder 1, %s18
      %p207 = scmp.lt.s32.totalorder %s18, 5
      %p208 = pnand %p206, %p207
      %p209 = pneg %p208
      // Predicated region
      $region9: #{tpu_custom_call.1} parent=5 // pred_check
        _
      $region10: #{tpu_custom_call.1} parent=5 // pred_check_branch
        %211 = sbr.rel (%p208) target = $region12
      $region11: #{tpu_custom_call.1} parent=5 // pred_region
        %s212 = ssub.s32 %s18, 1
        // Predicated region
        $region13: #{tpu_custom_call.1} parent=11 // pred_check
          %p213 = pneg %p107
        $region14: #{tpu_custom_call.1} parent=11 // pred_check_branch
          %215 = sbr.rel (%p213) target = $region16
        $region15: #{tpu_custom_call.1} parent=11 // pred_region
          _
        $region16: #{tpu_custom_call.1} parent=11 // pred_fallthru
          _
        // Predicated region
        $region17: #{tpu_custom_call.1} parent=11 // pred_check
          %p216 = pneg %p128
        $region18: #{tpu_custom_call.1} parent=11 // pred_check_branch
          %218 = sbr.rel (%p216) target = $region20
        $region19: #{tpu_custom_call.1} parent=11 // pred_region
          _
        $region20: #{tpu_custom_call.1} parent=11 // pred_fallthru
          _
        // Predicated region
        $region21: #{tpu_custom_call.1} parent=11 // pred_check
          %p219 = pneg %p149
        $region22: #{tpu_custom_call.1} parent=11 // pred_check_branch
          %221 = sbr.rel (%p219) target = $region24
        $region23: #{tpu_custom_call.1} parent=11 // pred_region
          _
        $region24: #{tpu_custom_call.1} parent=11 // pred_fallthru
          _
        // Predicated region
        $region25: #{tpu_custom_call.1} parent=11 // pred_check
          %p222 = pneg %p170
        $region26: #{tpu_custom_call.1} parent=11 // pred_check_branch
          %224 = sbr.rel (%p222) target = $region28
        $region27: #{tpu_custom_call.1} parent=11 // pred_region
          _
        $region28: #{tpu_custom_call.1} parent=11 // pred_fallthru
          _
      $region12: #{tpu_custom_call.1} parent=5 // pred_fallthru
        _
      %p225 = scmp.lt.s32.totalorder %s18, 4
      // Predicated region
      $region29: #{tpu_custom_call.1} parent=5 // pred_check
        %p226 = pneg %p225
      $region30: #{tpu_custom_call.1} parent=5 // pred_check_branch
        %228 = sbr.rel (%p226) target = $region32
      $region31: #{tpu_custom_call.1} parent=5 // pred_region
        // Predicated region
        $region33: #{tpu_custom_call.1} parent=31 // pred_check
          %p229 = pneg %p52
        $region34: #{tpu_custom_call.1} parent=31 // pred_check_branch
          %231 = sbr.rel (%p229) target = $region36
        $region35: #{tpu_custom_call.1} parent=31 // pred_region
          %s232 = sand.u32 %s42, 1
          %s233 = scalar_lea.sflag [#allocation3], %s232
          %s234 = sand.u32 %s42, 1
          %s235 = smul.addr %s234, 16
          %s236 = scalar_lea.vmem [#allocation2], %s235
          %s238 = ssub.s32 256, 256
          %239 = vsyncadd %s233, %s238
          %s240 = smul.addr %s25, 8
          %s241 = sadd.s32 %s26, %s240
          %s242 = smul.addr %s241, 64
          %s243 = scalar_lea.hbm %s0, %s242
          %s244 = sshll.u32 %s236, 4
          %s245 = int_to_ptr.vmem [resolvable:$true] %s244
          %250 = dma.hbm_to_vmem [thread:$0]  %s243, 256, %s245, %s233, 128, 64, 4
        $region36: #{tpu_custom_call.1} parent=31 // pred_fallthru
          _
        // Predicated region
        $region37: #{tpu_custom_call.1} parent=31 // pred_check
          %p251 = pneg %p80
        $region38: #{tpu_custom_call.1} parent=31 // pred_check_branch
          %253 = sbr.rel (%p251) target = $region40
        $region39: #{tpu_custom_call.1} parent=31 // pred_region
          %p254 = scmp.lt.s32.totalorder %s25, 1
          %s255 = scalar_select %p254, %s25, 1
          %p256 = scmp.lt.s32.totalorder %s26, 1
          %s257 = scalar_select %p256, %s26, 1
          %s258 = smul.addr %s255, 2
          %s259 = sadd.s32 %s257, %s258
          %s260 = smul.addr %s259, 4
          %s261 = scalar_lea.vmem %s1, %s260
        $region40: #{tpu_custom_call.1} parent=31 // pred_fallthru
          _
      $region32: #{tpu_custom_call.1} parent=5 // pred_fallthru
        _
      %p262 = scmp.le.s32.totalorder 1, %s18
      %p263 = scmp.lt.s32.totalorder %s18, 5
      %p264 = pnand %p262, %p263
      %p265 = pneg %p264
      // Predicated region
      $region41: #{tpu_custom_call.1} parent=5 // pred_check
        _
      $region42: #{tpu_custom_call.1} parent=5 // pred_check_branch
        %267 = sbr.rel (%p264) target = $region44
      $region43: #{tpu_custom_call.1} parent=5 // pred_region
        %s268 = ssub.s32 %s18, 1
        %s269 = sand.u32 %s45, 1
        %s270 = scalar_lea.sflag [#allocation3], %s269
        %s271 = sand.u32 %s45, 1
        %s272 = smul.addr %s271, 16
        %s273 = scalar_lea.vmem [#allocation2], %s272
        // Predicated region
        $region45: #{tpu_custom_call.1} parent=43 // pred_check
          %p274 = pneg %p58
        $region46: #{tpu_custom_call.1} parent=43 // pred_check_branch
          %276 = sbr.rel (%p274) target = $region48
        $region47: #{tpu_custom_call.1} parent=43 // pred_region
          %277 = dma.done %s270, 256
        $region48: #{tpu_custom_call.1} parent=43 // pred_fallthru
          _
        %s278 = sand.u32 %s45, 1
        %s279 = scalar_lea.sflag [#allocation3], %s278
        %s280 = sand.u32 %s45, 1
        %s281 = smul.addr %s280, 16
        %s282 = scalar_lea.vmem [#allocation2], %s281
        %p283 = pneg %p58
        %p284 = pneg %p55
        %p285 = scmp.lt.s32.totalorder %s27, 1
        %s286 = scalar_select %p285, %s27, 1
        %p287 = scmp.lt.s32.totalorder %s28, 1
        %s288 = scalar_select %p287, %s28, 1
        %s289 = smul.addr %s286, 2
        %s290 = sadd.s32 %s288, %s289
        %s291 = smul.addr %s290, 4
        %s292 = scalar_lea.vmem %s1, %s291
        %p293 = pneg %p86
        %p294 = pneg %p83
        %p295 = pneg %p107
        %p296 = pneg %p104
        %p297 = pneg %p128
        %p298 = pneg %p125
        %p299 = pneg %p149
        %p300 = pneg %p146
        %p301 = pneg %p170
        %p302 = pneg %p167
        %p303 = pneg %p198
        %p304 = pneg %p195
        %s305 = sand.u32 %s185, 1
        %s306 = scalar_lea.sflag [#allocation4], %s305
        %s307 = sand.u32 %s185, 1
        %s308 = scalar_lea.vmem [#allocation5], %s307
        %p309 = scmp.lt.s32.totalorder %s27, 1
        %s310 = scalar_select %p309, %s27, 1
        %p311 = scmp.lt.s32.totalorder %s28, 1
        %s312 = scalar_select %p311, %s28, 1
        %s313 = smul.addr %s310, 2
        %s314 = sadd.s32 %s312, %s313
        %s315 = smul.addr %s314, 4
        %s316 = scalar_lea.vmem %s1, %s315
        %v318 = vld [vmem:[%s273] sm:$0xf]
        %v319 = vld [vmem:[%s273 + $0x4] sm:$0xf]
        %v320 = vld [vmem:[%s273 + $0x8] sm:$0xf]
        %v321 = vld [vmem:[%s273 + $0xc] sm:$0xf]
        %v322 = vld [vmem:[%s2] sm:$0xf]
        %v323 = vld [vmem:[%s2 + $0x4] sm:$0xf]
        %v324 = vld [vmem:[%s2 + $0x8] sm:$0xf]
        %v325 = vld [vmem:[%s2 + $0xc] sm:$0xf]
        %v326 = vld [vmem:[%s3] sm:$0xff]
        %v327 = vld [vmem:[%s3 + $0x8] sm:$0xff]
        %v328 = vld [vmem:[%s3 + $0x10] sm:$0xff]
        %v329 = vld [vmem:[%s3 + $0x18] sm:$0xff]
        %331 = vset.pattern.permute.xlu0 0
        %332 = vperm.xlu0 %331, %v326
        %v333 = vpop.permute.xlu0 %332
        %336 = vset.pattern.permute.xlu0 0
        %337 = vperm.xlu0 %336, %v327
        %v338 = vpop.permute.xlu0 %337
        %341 = vset.pattern.permute.xlu0 0
        %342 = vperm.xlu0 %341, %v328
        %v343 = vpop.permute.xlu0 %342
        %346 = vset.pattern.permute.xlu0 0
        %347 = vperm.xlu0 %346, %v329
        %v348 = vpop.permute.xlu0 %347
        %v354 = vunpack.c.l.b16 %v322
        %v355 = vunpack.c.l.b16 %v323
        %v356 = vunpack.c.l.b16 %v324
        %v357 = vunpack.c.l.b16 %v325
        %v358 = vpack.c.b16 %v355, %v354
        %v359 = vpack.c.b16 %v357, %v356
        %v364 = vunpack.c.l.b16 %v318
        %v365 = vunpack.c.l.b16 %v319
        %v366 = vunpack.c.l.b16 %v320
        %v367 = vunpack.c.l.b16 %v321
        %v368 = vpack.c.b16 %v365, %v364
        %v369 = vpack.c.b16 %v367, %v366
        %vm372 = vcmask 261120
        %v374 = vsel %vm372, %v358, 0
        %v377 = vsel %vm372, %v359, 0
        %379 = vmatprep.subr.bf16.mxu0 0
        %380 = vmatpush1.bf16.msra.mxu0 %v368
        %381 = vmatprep.subr.bf16.mxu0 0
        %382 = vmatpush1.bf16.msra.mxu0 %v369
        %383 = vmatprep.subr.bf16.mxu0 0
        %384 = vmatpush1.bf16.msra.mxu0 0
        %385 = vmatprep.subr.bf16.mxu0 0
        %386 = vmatpush1.bf16.msra.mxu0 0
        %387 = vmatprep.subr.bf16.mxu0 0
        %388 = vmatpush1.bf16.msra.mxu0 0
        %389 = vmatprep.subr.bf16.mxu0 0
        %390 = vmatpush1.bf16.msra.mxu0 0
        %391 = vmatprep.subr.bf16.mxu0 0
        %392 = vmatpush1.bf16.msra.mxu0 0
        %393 = vmatprep.subr.bf16.mxu0 0
        %394 = vmatpush1.bf16.msra.mxu0 0
        %395 = vmatprep.subr.bf16.mxu0 0
        %396 = vmatpush1.bf16.msra.mxu0 0
        %397 = vmatprep.subr.bf16.mxu0 0
        %398 = vmatpush1.bf16.msra.mxu0 0
        %399 = vmatprep.subr.bf16.mxu0 0
        %400 = vmatpush1.bf16.msra.mxu0 0
        %401 = vmatprep.subr.bf16.mxu0 0
        %402 = vmatpush1.bf16.msra.mxu0 0
        %403 = vmatprep.subr.bf16.mxu0 0
        %404 = vmatpush1.bf16.msra.mxu0 0
        %405 = vmatprep.subr.bf16.mxu0 0
        %406 = vmatpush1.bf16.msra.mxu0 0
        %407 = vmatprep.subr.bf16.mxu0 0
        %408 = vmatpush1.bf16.msra.mxu0 0
        %409 = vmatprep.subr.bf16.mxu0 0
        %410 = vmatpush1.bf16.msra.mxu0 0
        %411 = vmatprep.mubr.bf16.mxu0 0
        %412 = vmatmul.mubr.bf16.gmra.mrb[0].mxu0 %v374
        %v413 = vpop.f32.mrb[0].mxu0
        %v414 = vadd.f32 %v333, %v413
        %v415 = vpop.f32.mrb[0].mxu0
        %v416 = vpop.f32.mrb[0].mxu0
        %v417 = vadd.f32 %v338, %v416
        %v418 = vpop.f32.mrb[0].mxu0
        %419 = vmatprep.mubr.bf16.mxu0 0
        %420 = vmatmul.mubr.bf16.gmra.mrb[0].mxu0 %v377
        %v421 = vpop.f32.mrb[0].mxu0
        %v422 = vadd.f32 %v343, %v421
        %v423 = vpop.f32.mrb[0].mxu0
        %v424 = vpop.f32.mrb[0].mxu0
        %v425 = vadd.f32 %v348, %v424
        %v426 = vpop.f32.mrb[0].mxu0
        %427 = vdwg.mxu0
        %v428 = vmax.f32 %v414, 0.0
        %v429 = vmax.f32 %v417, 0.0
        %v430 = vmax.f32 %v422, 0.0
        %v431 = vmax.f32 %v425, 0.0
        %v432 = vpack.c.bf16 %v429, %v428
        %v433 = vpack.c.bf16 %v431, %v430
        %v434 = vld [vmem:[%s4] sm:$0xf]
        %v435 = vld [vmem:[%s5] sm:$0xff]
        %437 = vset.pattern.permute.xlu0 0
        %438 = vperm.xlu0 %437, %v435
        %v439 = vpop.permute.xlu0 %438
        %v442 = vsel %vm372, %v434, 0
        %444 = vmatprep.subr.bf16.mxu0 0
        %445 = vmatpush1.bf16.msra.mxu0 %v432
        %446 = vmatprep.subr.bf16.mxu0 0
        %447 = vmatpush1.bf16.msra.mxu0 %v433
        %448 = vmatprep.subr.bf16.mxu0 0
        %449 = vmatpush1.bf16.msra.mxu0 0
        %450 = vmatprep.subr.bf16.mxu0 0
        %451 = vmatpush1.bf16.msra.mxu0 0
        %452 = vmatprep.subr.bf16.mxu0 0
        %453 = vmatpush1.bf16.msra.mxu0 0
        %454 = vmatprep.subr.bf16.mxu0 0
        %455 = vmatpush1.bf16.msra.mxu0 0
        %456 = vmatprep.subr.bf16.mxu0 0
        %457 = vmatpush1.bf16.msra.mxu0 0
        %458 = vmatprep.subr.bf16.mxu0 0
        %459 = vmatpush1.bf16.msra.mxu0 0
        %460 = vmatprep.subr.bf16.mxu0 0
        %461 = vmatpush1.bf16.msra.mxu0 0
        %462 = vmatprep.subr.bf16.mxu0 0
        %463 = vmatpush1.bf16.msra.mxu0 0
        %464 = vmatprep.subr.bf16.mxu0 0
        %465 = vmatpush1.bf16.msra.mxu0 0
        %466 = vmatprep.subr.bf16.mxu0 0
        %467 = vmatpush1.bf16.msra.mxu0 0
        %468 = vmatprep.subr.bf16.mxu0 0
        %469 = vmatpush1.bf16.msra.mxu0 0
        %470 = vmatprep.subr.bf16.mxu0 0
        %471 = vmatpush1.bf16.msra.mxu0 0
        %472 = vmatprep.subr.bf16.mxu0 0
        %473 = vmatpush1.bf16.msra.mxu0 0
        %474 = vmatprep.subr.bf16.mxu0 0
        %475 = vmatpush1.bf16.msra.mxu0 0
        %476 = vmatprep.mubr.bf16.mxu0 0
        %477 = vmatmul.mubr.bf16.gmra.mrb[0].mxu0 %v442
        %v478 = vpop.f32.mrb[0].mxu0
        %v479 = vadd.f32 %v439, %v478
        %v480 = vpop.f32.mrb[0].mxu0
        %v481 = vpop.f32.mrb[0].mxu0
        %v482 = vpop.f32.mrb[0].mxu0
        %483 = vdwg.mxu0
        %v484 = vrot.slane %v479, 4
        %v485 = vmax.f32 %v479, %v484
        %v486 = vrot.slane %v485, 2
        %v487 = vmax.f32 %v485, %v486
        %v488 = vrot.slane %v487, 1
        %v489 = vmax.f32 %v487, %v488
        %v490 = vsub.f32 %v479, %v489
        %v491 = vmul.f32 %v490, 1.442695
        %v492 = vpow.pop %v491
        %v493 = vrot.slane %v492, 4
        %v494 = vadd.f32 %v492, %v493
        %v495 = vrot.slane %v494, 2
        %v496 = vadd.f32 %v494, %v495
        %v497 = vrot.slane %v496, 1
        %v498 = vadd.f32 %v496, %v497
        %v499 = vld [vmem:[%s316] sm:$0xf]
        %500 = vrot.lane.b32.xlu0 %v499, 1
        %v501 = vpop.permute.xlu0 %500
        %502 = vrot.lane.b32.xlu0 %v499, 127
        %v503 = vpop.permute.xlu0 %502
        %v504 = vmul.f32 %v501, %v492
        %vm505 = vcmask 1042432
        %v506 = vsel %vm505, %v504, 0.0
        %v507 = vrot.slane %v506, 4
        %v508 = vadd.f32 %v506, %v507
        %v509 = vrot.slane %v508, 2
        %v510 = vadd.f32 %v508, %v509
        %v511 = vrot.slane %v510, 1
        %v512 = vadd.f32 %v510, %v511
        %v514 = vrot.slane %v492, 3
        %v516 = vmul.f32 %v503, %v514
        %v517 = vsel %vm505, %v516, 0.0
        %v518 = vrot.slane %v517, 4
        %v519 = vadd.f32 %v517, %v518
        %v520 = vrot.slane %v519, 2
        %v521 = vadd.f32 %v519, %v520
        %v522 = vrot.slane %v521, 1
        %v523 = vadd.f32 %v521, %v522
        %v524 = vrot.slane %v492, 6
        %v526 = vmul.f32 %v499, %v524
        %v527 = vrot.slane %v492, 5
        %v529 = vmul.f32 %v499, %v527
        %v531 = vrot.slane %v529, 2
        %v533 = vadd.f32 %v526, %v531
        %v534 = vlaneseq
        %v535 = vand.u32 %v534, 127
        %vm536 = vcmp.lt.s32.totalorder %v535, 0
        %v537 = vsub.s32 0, %v535
        %v538 = vsel %vm536, %v537, %v535
        %v539 = vshrl.u32 %v538, 4
        %v540 = vand.u32 %v538, 15
        %v541 = vsub.s32 0, %v540
        %v542 = vsel %vm536, %v541, %v540
        %vm543 = vcmp.ne.s32.totalorder %v542, 0
        %vm544 = vcmp.lt.s32.totalorder %v542, 0
        %vm545 = vmand %vm544, %vm543
        %v546 = vadd.s32 %v542, 16
        %v547 = vsel %vm545, %v546, %v542
        %vm548 = vcmp.ne.s32.totalorder %v547, 0
        %v549 = vsel %vm548, %v512, 0.0
        %vm550 = vcmp.ne.s32.totalorder %v547, 15
        %v551 = vsel %vm550, %v523, 0.0
        %v552 = vadd.f32 %v549, %v551
        %v553 = vadd.f32 %v552, %v533
        %v554 = vrcp.pop %v498
        %v555 = vmul.f32 %v553, %v554
        %vm556 = vcmp.gt.f32.partialorder %v499, 0.0
        %v558 = vrot.slane %v555, 5
        %v561 = vrot.slane %v499, 6
        %v563 = vsel %vm556, %v558, %v561
        %564 = vst [vmem:[%s308 - $0x3] sm:$0x8] %v563
        %s565 = sand.u32 %s185, 1
        %s566 = scalar_lea.sflag [#allocation4], %s565
        %s567 = sand.u32 %s185, 1
        %s568 = scalar_lea.vmem [#allocation5], %s567
        // Predicated region
        $region49: #{tpu_custom_call.1} parent=43 // pred_check
          %p569 = pneg %p195
        $region50: #{tpu_custom_call.1} parent=43 // pred_check_branch
          %571 = sbr.rel (%p569) target = $region52
        $region51: #{tpu_custom_call.1} parent=43 // pred_region
          %s573 = ssub.s32 16, 16
          %574 = vsyncadd %s566, %s573
          %s575 = smul.addr %s27, 2
          %s576 = sadd.s32 %s28, %s575
          %s577 = smul.addr %s576, 16
          %s578 = scalar_lea.hbm %s6, %s577
          %s580 = sshll.u32 %s568, 4
          %s581 = int_to_ptr.vmem [resolvable:$true] %s580
          %583 = dma.vmem_to_hbm [thread:$0]  %s581, 16, %s578, %s566
        $region52: #{tpu_custom_call.1} parent=43 // pred_fallthru
          _
      $region44: #{tpu_custom_call.1} parent=5 // pred_fallthru
        _
      %p584 = scmp.le.s32.totalorder 2, %s18
      // Predicated region
      $region53: #{tpu_custom_call.1} parent=5 // pred_check
        %p585 = pneg %p584
      $region54: #{tpu_custom_call.1} parent=5 // pred_check_branch
        %587 = sbr.rel (%p585) target = $region56
      $region55: #{tpu_custom_call.1} parent=5 // pred_region
        %s588 = ssub.s32 %s18, 2
        // Predicated region
        $region57: #{tpu_custom_call.1} parent=55 // pred_check
          %p589 = pneg %p201
        $region58: #{tpu_custom_call.1} parent=55 // pred_check_branch
          %591 = sbr.rel (%p589) target = $region60
        $region59: #{tpu_custom_call.1} parent=55 // pred_region
          %s592 = sand.u32 %s186, 1
          %s593 = scalar_lea.sflag [#allocation4], %s592
          %s594 = sand.u32 %s186, 1
          %s595 = scalar_lea.vmem [#allocation5], %s594
          %596 = dma.done %s593, 16
        $region60: #{tpu_custom_call.1} parent=55 // pred_fallthru
          _
      $region56: #{tpu_custom_call.1} parent=5 // pred_fallthru
        _
    $region6: #{tpu_custom_call.1} parent=1 // loop_footer
      %s22 = sadd.s32 1, %s18
    $region7: #{tpu_custom_call.1} parent=1 // loop_footer_branch
      %17 = sbr.rel target = $region3
    $region8: #{tpu_custom_call.1} parent=1 // loop_exit
      _
    %597 = vsyncpa [#allocation3], 1
    %s598 = scalar_lea.sflag [#allocation3], 1
    %599 = vsyncpa %s598, 1
    %600 = vsyncpa [#allocation4], 1
    %s601 = scalar_lea.sflag [#allocation4], 1
    %602 = vsyncpa %s601, 1

</llo_original>
